<compile_context>
chip_gen: v6e
topology: v6e:2x2x1
jax: 0.10.0
libtpu: 0.0.40
codegen_flags: <defaults>
</compile_context>

<pallas_src>
import jax
import jax.numpy as jnp
from jax.experimental import pallas as pl
from jax.experimental.pallas import tpu as pltpu

_LANES = 128
_MAX_ROWS_PER_BLOCK = 512      # (512,128) f32 tile = 256 KiB; 2x-buffered well
                               # under the 32 MiB default scoped VMEM on v7x.
_NEG_SENTINEL = -1.0e4         # softplus(-1e4) == 0 exactly in f32 padding


def _round_up(x, m):
    return ((x + m - 1) // m) * m


def _fused_obj_bce_kernel(scale_ref, x_ref, o_ref):
    """Per-block scaled sum of softplus(x) == scale * sum BCEWithLogits(x, 0).

    Each grid step writes its own lane-dense (1, 8, 128) partial (no
    cross-step carry), so the grid axis is safely "parallel".
    """
    i = pl.program_id(0)
    x = x_ref[...].astype(jnp.float32)              # upcast once per tile
    # numerically stable softplus: max(x, 0) + log1p(exp(-|x|))  (EUP ops,
    # free filler under the memory-bound roofline)
    sp = jnp.maximum(x, 0.0) + jnp.log1p(jnp.exp(-jnp.abs(x)))
    # Fold rows down to a single (8,128) vreg with VPU adds (tile-aligned
    # reshape, no cross-lane/XLU work, no scalar loop-carry).
    partial = jnp.sum(sp.reshape(-1, 8, _LANES), axis=0)
    o_ref[0] = scale_ref[i] * partial               # per-layer balance/numel


def fused_obj_bce_mean(obj_logits_list, layer_weights):
    """sum_i layer_weights[i] * mean(BCEWithLogits(obj_logits_list[i], 0))
    computed in a single Pallas call over the concatenated objectness slabs."""
    numels = [int(x.size) for x in obj_logits_list]
    rows_total = max(1, -(-sum(numels) // _LANES))
    tm = min(_MAX_ROWS_PER_BLOCK, _round_up(rows_total, 8))
    block_elems = tm * _LANES

    # TODO(synk): for very large BEV heads, DMA (rows, no) tiles with
    # memory_space=pl.ANY and extract channel 4 in-kernel to avoid the
    # wrapper-side stride-60 gather copy; for these head sizes the lane-dense
    # slab path below is simpler and already HBM-minimal (no mask stream).
    slabs, scales = [], []
    for x, w, n in zip(obj_logits_list, layer_weights, numels):
        n_pad = _round_up(max(n, 1), block_elems)
        flat = jnp.pad(x.reshape(-1), (0, n_pad - n),
                       constant_values=_NEG_SENTINEL)
        slabs.append(flat)
        scales.extend([float(w) / max(n, 1)] * (n_pad // block_elems))

    x_all = jnp.concatenate(slabs).reshape(-1, _LANES)
    block_scales = jnp.asarray(scales, jnp.float32)
    n_blocks = x_all.shape[0] // tm

    partials = pl.pallas_call(
        _fused_obj_bce_kernel,
        out_shape=jax.ShapeDtypeStruct((n_blocks, 8, _LANES), jnp.float32),
        grid_spec=pltpu.PrefetchScalarGridSpec(
            num_scalar_prefetch=1,
            grid=(n_blocks,),
            in_specs=[pl.BlockSpec((tm, _LANES), lambda i, scales: (i, 0))],
            out_specs=pl.BlockSpec((1, 8, _LANES),
                                   lambda i, scales: (i, 0, 0)),
        ),
        compiler_params=pltpu.CompilerParams(
            dimension_semantics=("parallel",)),
    )(block_scales, x_all)
    return jnp.sum(partials)


class BEVLossPallas:
    """JAX/Pallas port of BEVLoss.forward (the reachable, non-exit()ing path)."""

    def __init__(self,
                 anchors=((10, 13, 16, 30, 33, 23), (10, 13, 16, 30, 33, 23)),
                 anchor_t=4, num_classes=23, num_masks=32, eps=1e-5,
                 weight_box_loss=1.0, weight_obj_loss=1.0, weight_cls_loss=1.0):
        self.anchor_t = anchor_t
        self.num_anchors = len(anchors[0]) // 2
        self.num_classes = num_classes
        self.num_layers = len(anchors)
        # deterministic "parameters" (the module has no learnable weights)
        self.anchors = jnp.asarray(anchors, jnp.float32).reshape(
            self.num_layers, -1, 2)
        self.num_masks = num_masks
        self.weight_box_loss = weight_box_loss
        self.weight_obj_loss = weight_obj_loss
        self.weight_cls_loss = weight_cls_loss
        self.cp, self.cn = 1.0 - 0.5 * eps, 0.5 * eps   # smooth_BCE
        self.balance = {2: [4.0, 4.0]}.get(self.num_layers,
                                           [4.0, 4.0, 4.0, 4.0, 4.0])
        self.gr = 1.0
        self.overlap = True

    def __call__(self, segments, proto, targets, masks):
        bs = proto.shape[0]
        lbox = jnp.zeros((1,), jnp.float32)
        lcls = jnp.zeros((1,), jnp.float32)
        lseg = jnp.zeros((1,), jnp.float32)

        # The reference forward calls exit() inside the `if n:` branch, so the
        # only forward that returns is the one with zero matched targets.
        # TODO(synk): the n>0 branch (CIoU box loss, class BCE, crop_mask /
        # proto matmul seg loss, build_targets boolean-mask gather) is
        # unreachable in the reference and relies on data-dependent shapes
        # (t[j], b.unique()); not implemented here.
        assert targets.shape[0] == 0, (
            "reference BEVLoss.forward exit()s whenever targets are matched; "
            "only the empty-target path is reproducible")

        # n == 0 for every layer => tobj stays all-zeros; the BCEobj target is
        # zeros, so lobj = sum_i balance[i] * mean(softplus(seg_i[..., 4])),
        # fused into one Pallas call.
        obj_logits = [seg[..., 4] for seg in segments]
        lobj = fused_obj_bce_mean(
            obj_logits, self.balance[:len(segments)]).reshape(1)

        lbox = lbox * self.weight_box_loss
        lobj = lobj * self.weight_obj_loss
        lcls = lcls * self.weight_cls_loss
        lseg = lseg * self.weight_box_loss / bs
        loss = (lbox + lobj + lcls + lseg) * bs
        return loss, jnp.concatenate([lbox, lseg, lobj, lcls])


if __name__ == "__main__":
    key = jax.random.PRNGKey(0)
    bs, na, nc, nm = 2, 3, 23, 32
    no = 5 + nc + nm                      # 60 prediction channels
    k1, k2, k3 = jax.random.split(key, 3)

    # two detection layers (like YOLO P4/P5 heads), small spatial sizes
    seg0 = jax.random.normal(k1, (bs, na, 8, 8, no), jnp.float32)
    seg1 = jax.random.normal(k2, (bs, na, 4, 4, no), jnp.float32)
    proto = jax.random.normal(k3, (bs, nm, 16, 16), jnp.float32)
    targets = jnp.zeros((0, 6), jnp.float32)   # zero targets: the only path the
                                               # reference forward completes
    masks = jnp.zeros((bs, 32, 32), jnp.float32)

    loss_fn = BEVLossPallas()
    loss, comps = loss_fn([seg0, seg1], proto, targets, masks)
    jax.block_until_ready((loss, comps))

    # pure-JAX reference check of the hot path
    ref_lobj = sum(4.0 * jnp.mean(jax.nn.softplus(s[..., 4]))
                   for s in (seg0, seg1))
    ref_loss = ref_lobj * bs
    assert jnp.allclose(loss[0], ref_loss, rtol=1e-5, atol=1e-5), (loss, ref_loss)
    assert jnp.allclose(comps[2], ref_lobj, rtol=1e-5, atol=1e-5)

    print("KERNEL_OK")
</pallas_src>

<mosaic_0001>
module attributes {stable_mosaic.version = 11 : i64} {
  func.func @_fused_obj_bce_kernel(%arg0: i32, %arg1: memref<2xf32, #tpu.memory_space<smem>>, %arg2: memref<8x128xf32, #tpu.memory_space<vmem>>, %arg3: memref<1x8x128xf32, #tpu.memory_space<vmem>>) attributes {dimension_semantics = [#tpu.dimension_semantics<parallel>], iteration_bounds = array<i64: 2>, scalar_prefetch = 1 : i64, scratch_operands = 0 : i64, tpu.core_type = #tpu.core_type<tc>, window_params = [{transform_indices = @transform_0, window_bounds = array<i64: 8, 128>}, {transform_indices = @transform_1, window_bounds = array<i64: 1, 8, 128>}]} {
    %c0 = arith.constant 0 : index
    %c0_0 = arith.constant 0 : index
    %0 = vector.load %arg2[%c0, %c0_0] : memref<8x128xf32, #tpu.memory_space<vmem>>, vector<8x128xf32>
    %cst = arith.constant 0.000000e+00 : f32
    %1 = vector.broadcast %cst : f32 to vector<8x128xf32>
    %2 = arith.maximumf %0, %1 : vector<8x128xf32>
    %3 = math.absf %0 : vector<8x128xf32>
    %cst_1 = arith.constant 0.000000e+00 : f32
    %4 = vector.broadcast %cst_1 : f32 to vector<8x128xf32>
    %5 = arith.subf %4, %3 : vector<8x128xf32>
    %6 = math.exp %5 : vector<8x128xf32>
    %7 = math.log1p %6 : vector<8x128xf32>
    %8 = arith.addf %2, %7 : vector<8x128xf32>
    %9 = vector.shape_cast %8 : vector<8x128xf32> to vector<1x8x128xf32>
    %cst_2 = arith.constant dense<0.000000e+00> : vector<8x128xf32>
    %10 = vector.multi_reduction <add>, %9, %cst_2 [0] : vector<1x8x128xf32> to vector<8x128xf32>
    %11 = arith.index_cast %arg0 : i32 to index
    %12 = memref.load %arg1[%11] : memref<2xf32, #tpu.memory_space<smem>>
    %13 = vector.broadcast %12 : f32 to vector<8x128xf32>
    %14 = arith.mulf %13, %10 : vector<8x128xf32>
    %c0_3 = arith.constant 0 : index
    %c0_4 = arith.constant 0 : index
    %c0_5 = arith.constant 0 : index
    %15 = vector.load %arg3[%c0_3, %c0_4, %c0_5] : memref<1x8x128xf32, #tpu.memory_space<vmem>>, vector<1x8x128xf32>
    %16 = vector.shape_cast %15 : vector<1x8x128xf32> to vector<8x128xf32>
    %17 = vector.shape_cast %14 : vector<8x128xf32> to vector<1x8x128xf32>
    tpu.vector_store %arg3[%c0_3, %c0_4, %c0_5], %17 {strides = array<i32>} : memref<1x8x128xf32, #tpu.memory_space<vmem>>, vector<1x8x128xf32>,
    return
  }
  func.func @transform_0(%arg0: i32, %arg1: memref<2xf32, #tpu.memory_space<smem>>) -> (i32, i32) {
    %c0_i32 = arith.constant 0 : i32
    %c0_i32_0 = arith.constant 0 : i32
    return %arg0, %c0_i32 : i32, i32
  }
  func.func @transform_1(%arg0: i32, %arg1: memref<2xf32, #tpu.memory_space<smem>>) -> (i32, i32, i32) {
    %c0_i32 = arith.constant 0 : i32
    %c0_i32_0 = arith.constant 0 : i32
    %c0_i32_1 = arith.constant 0 : i32
    return %arg0, %c0_i32, %c0_i32_0 : i32, i32, i32
  }
}

</mosaic_0001>

<llo_original>
// kernel: tpu_custom_call.1
$region0: #{tpu_custom_call.1}
  #allocation0 [shape = 'u32[]', space=smem, size = 0x4, offset = 0x4, fixed_abs, tag = 'smem constant byte address 0x4 - core index']
  #allocation1 [shape = 'u32[144,128]{1,0:T(1,128)}', space=vmem, size = 0x12000, scoped, tag = 'internal scratch']
  #allocation2 [shape = 's32[1]{0}', space=sflag, size = 0x4, scoped, tag = 'scoped memory for tpu_custom_call.1']
  #allocation3 [shape = 'u8[512]{0}', space=smem, size = 0x200, scoped, tag = 'prefetched SMEM operand 0']
  %s0 = inlined_call_operand.hbm [shape: f32[2], index: 0, kind: input, shape index: {}]
  %s1 = inlined_call_operand.hbm [shape: f32[16,128], index: 1, kind: input, shape index: {}]
  %s2 = inlined_call_operand.hbm [shape: f32[2,8,128], index: 2, kind: output, shape index: {}]
  %s3 = sld [smem:[#allocation0]]
  $region41: #{tpu_custom_call.1} parent=0
    _
  %s5 = ssub.s32 1, %s3
  %s6 = scalar_select 0, %s5, %s3
  %8 = dma.hbm_to_smem %s0, 16, [#allocation3], [#allocation2]
  %9 = dma.done [#allocation2], 16
  %10 = sfence
  $region1: #{tpu_custom_call.1} parent=0
    #allocation4 [shape = 'u8[8192]{0}', space=vmem, size = 0x2000, scoped, tag = 'input window, operand 1']
    #allocation5 [shape = 's32[2]{0}', space=sflag, size = 0x8, scoped, tag = 'scoped memory for tpu_custom_call.1']
    #allocation6 [shape = 's32[2]{0}', space=sflag, size = 0x8, scoped, tag = 'scoped memory for tpu_custom_call.1']
    #allocation7 [shape = 'u8[8192]{0}', space=vmem, size = 0x2000, scoped, tag = 'output window, operand 0']
    %11 = vsyncpa [#allocation5], 0
    %s12 = scalar_lea.sflag [#allocation5], 1
    %13 = vsyncpa %s12, 0
    %14 = vsyncpa [#allocation6], 0
    %s15 = scalar_lea.sflag [#allocation6], 1
    %16 = vsyncpa %s15, 0
    loop: start=0, step=1, limit=4
    $region2: #{tpu_custom_call.1} parent=1 // loop_pre_header
      _
    $region3: #{tpu_custom_call.1} parent=1 // loop_header
      %s18 = sphi 0, %s22
      %p19 = scmp.ge.s32.totalorder %s18, 4
      %s28 = sphi 0, %s30
      %s31 = sphi 0, %s28
      %s32 = sphi 0, %s31
      %s48 = sphi 0, %s32
      %s54 = sphi 0, %s56
      %s57 = sphi 0, %s54
      %s58 = sphi 0, %s57
      %s74 = sphi 0, %s58
    $region4: #{tpu_custom_call.1} parent=1 // loop_header_branch
      %21 = sbr.rel (%p19) target = $region8
    $region5: #{tpu_custom_call.1} parent=1 // loop_body
      %s23 = ssub.s32 %s18, 1
      %s24 = ssub.s32 %s18, 2
      %s25 = sadd.s32 %s18, 1
      %s26 = ssub.s32 %s18, %s25
      %p27 = scmp.eq.s32.totalorder %s26, 0
      %s29 = sadd.s32 %s28, 1
      %s30 = scalar_select %p27, %s28, %s29
      %p33 = pneg %p27
      %p34 = scmp.eq.s32.totalorder %s18, 1
      %p35 = por %p33, %p34
      %p36 = scmp.ne.s32.totalorder %s28, %s31
      %p37 = scmp.eq.s32.totalorder %s18, 0
      %p38 = por %p36, %p37
      %p39 = scmp.ne.s32.totalorder %s28, %s31
      %p40 = scmp.eq.s32.totalorder %s23, 1
      %p41 = por %p39, %p40
      %p42 = scmp.ne.s32.totalorder %s31, %s32
      %p43 = scmp.eq.s32.totalorder %s23, 0
      %p44 = por %p42, %p43
      %p45 = scmp.ne.s32.totalorder %s31, %s32
      %p46 = scmp.eq.s32.totalorder %s24, 1
      %p47 = por %p45, %p46
      %p49 = scmp.ne.s32.totalorder %s32, %s48
      %p50 = scmp.eq.s32.totalorder %s24, 0
      %p51 = por %p49, %p50
      %s52 = ssub.s32 %s18, %s25
      %p53 = scmp.eq.s32.totalorder %s52, 0
      %s55 = sadd.s32 %s54, 1
      %s56 = scalar_select %p53, %s54, %s55
      %p59 = pneg %p53
      %p60 = scmp.eq.s32.totalorder %s18, 1
      %p61 = por %p59, %p60
      %p62 = scmp.ne.s32.totalorder %s54, %s57
      %p63 = scmp.eq.s32.totalorder %s18, 0
      %p64 = por %p62, %p63
      %p65 = scmp.ne.s32.totalorder %s54, %s57
      %p66 = scmp.eq.s32.totalorder %s23, 1
      %p67 = por %p65, %p66
      %p68 = scmp.ne.s32.totalorder %s57, %s58
      %p69 = scmp.eq.s32.totalorder %s23, 0
      %p70 = por %p68, %p69
      %p71 = scmp.ne.s32.totalorder %s57, %s58
      %p72 = scmp.eq.s32.totalorder %s24, 1
      %p73 = por %p71, %p72
      %p75 = scmp.ne.s32.totalorder %s58, %s74
      %p76 = scmp.eq.s32.totalorder %s24, 0
      %p77 = por %p75, %p76
      %p78 = scmp.le.s32.totalorder 1, %s18
      %p79 = scmp.lt.s32.totalorder %s18, 3
      %p80 = pnand %p78, %p79
      %p81 = pneg %p80
      // Predicated region
      $region9: #{tpu_custom_call.1} parent=5 // pred_check
        _
      $region10: #{tpu_custom_call.1} parent=5 // pred_check_branch
        %83 = sbr.rel (%p80) target = $region12
      $region11: #{tpu_custom_call.1} parent=5 // pred_region
        %s84 = ssub.s32 %s18, 1
      $region12: #{tpu_custom_call.1} parent=5 // pred_fallthru
        _
      %p85 = scmp.lt.s32.totalorder %s18, 2
      // Predicated region
      $region13: #{tpu_custom_call.1} parent=5 // pred_check
        %p86 = pneg %p85
      $region14: #{tpu_custom_call.1} parent=5 // pred_check_branch
        %88 = sbr.rel (%p86) target = $region16
      $region15: #{tpu_custom_call.1} parent=5 // pred_region
        // Predicated region
        $region17: #{tpu_custom_call.1} parent=15 // pred_check
          %p89 = pneg %p38
        $region18: #{tpu_custom_call.1} parent=15 // pred_check_branch
          %91 = sbr.rel (%p89) target = $region20
        $region19: #{tpu_custom_call.1} parent=15 // pred_region
          %s92 = sand.u32 %s28, 1
          %s93 = scalar_lea.sflag [#allocation5], %s92
          %s94 = sand.u32 %s28, 1
          %s95 = smul.addr %s94, 8
          %s96 = scalar_lea.vmem [#allocation4], %s95
          %s98 = ssub.s32 128, 128
          %99 = vsyncadd %s93, %s98
          %s100 = smul.addr %s18, 128
          %s101 = scalar_lea.hbm %s1, %s100
          %s103 = sshll.u32 %s96, 4
          %s104 = int_to_ptr.vmem [resolvable:$true] %s103
          %106 = dma.hbm_to_vmem [thread:$0]  %s101, 128, %s104, %s93
        $region20: #{tpu_custom_call.1} parent=15 // pred_fallthru
          _
      $region16: #{tpu_custom_call.1} parent=5 // pred_fallthru
        _
      %p107 = scmp.le.s32.totalorder 1, %s18
      %p108 = scmp.lt.s32.totalorder %s18, 3
      %p109 = pnand %p107, %p108
      %p110 = pneg %p109
      // Predicated region
      $region21: #{tpu_custom_call.1} parent=5 // pred_check
        _
      $region22: #{tpu_custom_call.1} parent=5 // pred_check_branch
        %112 = sbr.rel (%p109) target = $region24
      $region23: #{tpu_custom_call.1} parent=5 // pred_region
        %s113 = ssub.s32 %s18, 1
        %s114 = sand.u32 %s31, 1
        %s115 = scalar_lea.sflag [#allocation5], %s114
        %s116 = sand.u32 %s31, 1
        %s117 = smul.addr %s116, 8
        %s118 = scalar_lea.vmem [#allocation4], %s117
        // Predicated region
        $region25: #{tpu_custom_call.1} parent=23 // pred_check
          %p119 = pneg %p44
        $region26: #{tpu_custom_call.1} parent=23 // pred_check_branch
          %121 = sbr.rel (%p119) target = $region28
        $region27: #{tpu_custom_call.1} parent=23 // pred_region
          %122 = dma.done %s115, 128
        $region28: #{tpu_custom_call.1} parent=23 // pred_fallthru
          _
        %s123 = sand.u32 %s31, 1
        %s124 = scalar_lea.sflag [#allocation5], %s123
        %s125 = sand.u32 %s31, 1
        %s126 = smul.addr %s125, 8
        %s127 = scalar_lea.vmem [#allocation4], %s126
        %p128 = pneg %p44
        %p129 = pneg %p41
        %p130 = pneg %p70
        %p131 = pneg %p67
        %s132 = sand.u32 %s57, 1
        %s133 = scalar_lea.sflag [#allocation6], %s132
        %s134 = sand.u32 %s57, 1
        %s135 = smul.addr %s134, 8
        %s136 = scalar_lea.vmem [#allocation7], %s135
        %v137 = vld [vmem:[%s118] sm:$0xff]
        %v138 = vmax.f32 %v137, 0.0
        %v139 = vand.u32 2147483647, %v137
        %v140 = vsub.f32 0.0, %v139
        %v141 = vmul.f32 %v140, 1.442695
        %v142 = vpow.pop %v141
        %v143 = vadd.f32 %v142, 1.0
        %v144 = vlog2.pop %v143
        %v145 = vmul.f32 %v144, 0.6931472
        %v146 = vmul.f32 -0.5, %v142
        %v147 = vadd.f32 %v146, 1.0
        %v148 = vmul.f32 %v147, %v142
        %v149 = vand.u32 2147483647, %v142
        %vm150 = vcmp.lt.f32.partialorder %v149, 0.0004427343
        %v151 = vsel %vm150, %v148, %v145
        %v152 = vadd.f32 %v138, %v151
        %v153 = vadd.f32 %v152, 0.0
        %s154 = sld [smem:[#allocation3 + %s23]]
        %v155 = vstv %s154
        %v156 = vmul.f32 %v155, %v153
        %157 = vst [vmem:[%s136] sm:$0xff] %v156
        %s158 = sand.u32 %s57, 1
        %s159 = scalar_lea.sflag [#allocation6], %s158
        %s160 = sand.u32 %s57, 1
        %s161 = smul.addr %s160, 8
        %s162 = scalar_lea.vmem [#allocation7], %s161
        // Predicated region
        $region29: #{tpu_custom_call.1} parent=23 // pred_check
          %p163 = pneg %p67
        $region30: #{tpu_custom_call.1} parent=23 // pred_check_branch
          %165 = sbr.rel (%p163) target = $region32
        $region31: #{tpu_custom_call.1} parent=23 // pred_region
          %s167 = ssub.s32 128, 128
          %168 = vsyncadd %s159, %s167
          %s169 = smul.addr %s23, 128
          %s170 = scalar_lea.hbm %s2, %s169
          %s172 = sshll.u32 %s162, 4
          %s173 = int_to_ptr.vmem [resolvable:$true] %s172
          %175 = dma.vmem_to_hbm [thread:$0]  %s173, 128, %s170, %s159
        $region32: #{tpu_custom_call.1} parent=23 // pred_fallthru
          _
      $region24: #{tpu_custom_call.1} parent=5 // pred_fallthru
        _
      %p176 = scmp.le.s32.totalorder 2, %s18
      // Predicated region
      $region33: #{tpu_custom_call.1} parent=5 // pred_check
        %p177 = pneg %p176
      $region34: #{tpu_custom_call.1} parent=5 // pred_check_branch
        %179 = sbr.rel (%p177) target = $region36
      $region35: #{tpu_custom_call.1} parent=5 // pred_region
        %s180 = ssub.s32 %s18, 2
        // Predicated region
        $region37: #{tpu_custom_call.1} parent=35 // pred_check
          %p181 = pneg %p73
        $region38: #{tpu_custom_call.1} parent=35 // pred_check_branch
          %183 = sbr.rel (%p181) target = $region40
        $region39: #{tpu_custom_call.1} parent=35 // pred_region
          %s184 = sand.u32 %s58, 1
          %s185 = scalar_lea.sflag [#allocation6], %s184
          %s186 = sand.u32 %s58, 1
          %s187 = smul.addr %s186, 8
          %s188 = scalar_lea.vmem [#allocation7], %s187
          %189 = dma.done %s185, 128
        $region40: #{tpu_custom_call.1} parent=35 // pred_fallthru
          _
      $region36: #{tpu_custom_call.1} parent=5 // pred_fallthru
        _
    $region6: #{tpu_custom_call.1} parent=1 // loop_footer
      %s22 = sadd.s32 1, %s18
    $region7: #{tpu_custom_call.1} parent=1 // loop_footer_branch
      %17 = sbr.rel target = $region3
    $region8: #{tpu_custom_call.1} parent=1 // loop_exit
      _
    %190 = vsyncpa [#allocation5], 1
    %s191 = scalar_lea.sflag [#allocation5], 1
    %192 = vsyncpa %s191, 1
    %193 = vsyncpa [#allocation6], 1
    %s194 = scalar_lea.sflag [#allocation6], 1
    %195 = vsyncpa %s194, 1

</llo_original>
